<compile_context>
chip_gen: v7x
topology: tpu7x:2x2x1
jax: 0.10.0
libtpu: 0.0.40
codegen_flags: <defaults>
</compile_context>

<pallas_src>
import functools

import jax
import jax.numpy as jnp
from jax.experimental import pallas as pl
from jax.experimental.pallas import tpu as pltpu

IN_DIM = 2560
H1, H2, H3 = 512, 128, 128
OUT1 = 1          # linear2 out_features   -> packed lane 0
OUT2 = 2          # linear1_4 out_features -> packed lanes 1..2
PAD = 128         # lane-dense packed output width


def _round_up(n, m):
    return (n + m - 1) // m * m


# ----------------------------------------------------------------------------
# Kernel: one fused matmul over the packed weight slab.
# ----------------------------------------------------------------------------
def _new_fc_kernel(x_ref, w_ref, b_ref, o_ref):
    y = jnp.dot(x_ref[...], w_ref[...], preferred_element_type=jnp.float32)
    o_ref[...] = (y + b_ref[...]).astype(o_ref.dtype)


# ----------------------------------------------------------------------------
# One-time parameter preprocessing (NOT in the per-call path).
# ----------------------------------------------------------------------------
def prepare_params(params, weight_dtype=jnp.float32):
    """Fold linear1_1..linear1_4 into one (2560, 2) linear, pack it with
    linear2 into a single lane-dense (2560, 128) weight slab + (1, 128) bias.

    weight_dtype=jnp.bfloat16 halves streamed HBM bytes (MXU takes bf16 with
    f32 accumulation) at a small accuracy cost; default f32 keeps the 1e-4
    match against the unfused reference.
    """
    (w1, b1), (w2, b2), (w3, b3), (w4, b4), (wl2, bl2) = params
    f32 = jnp.float32
    w1, b1 = jnp.asarray(w1, f32), jnp.asarray(b1, f32)
    w2, b2 = jnp.asarray(w2, f32), jnp.asarray(b2, f32)
    w3, b3 = jnp.asarray(w3, f32), jnp.asarray(b3, f32)
    w4, b4 = jnp.asarray(w4, f32), jnp.asarray(b4, f32)
    wl2, bl2 = jnp.asarray(wl2, f32), jnp.asarray(bl2, f32)

    # y2 = ((x@W1.T + b1)@W2.T + b2)@W3.T + b3)@W4.T + b4
    #    = x @ (W1.T @ W2.T @ W3.T @ W4.T) + b_chain
    w_chain = w1.T @ w2.T @ w3.T @ w4.T                      # (2560, 2)
    b_chain = ((b1 @ w2.T + b2) @ w3.T + b3) @ w4.T + b4     # (2,)

    w_packed = jnp.zeros((IN_DIM, PAD), f32)
    w_packed = w_packed.at[:, 0:OUT1].set(wl2.T)             # lane 0: linear2
    w_packed = w_packed.at[:, OUT1:OUT1 + OUT2].set(w_chain)  # lanes 1..2

    b_packed = jnp.zeros((1, PAD), f32)
    b_packed = b_packed.at[0, 0:OUT1].set(bl2)
    b_packed = b_packed.at[0, OUT1:OUT1 + OUT2].set(b_chain)

    return w_packed.astype(weight_dtype), b_packed  # bias stays f32 (VPU add)


# ----------------------------------------------------------------------------
# Forward wrapper.
# ----------------------------------------------------------------------------
@functools.partial(jax.jit, static_argnames=("block_m",))
def new_fc_forward(x, w_packed, b_packed, *, block_m=256):
    """x: (B, 2560). Returns (x1: (B, 1), x2: (B, 2))."""
    B = x.shape[0]
    x = x.astype(w_packed.dtype)

    # Batch tiling: block rows must be a multiple of 8 (sublane); pad B if needed.
    bm = min(block_m, _round_up(B, 8))
    b_pad = _round_up(B, bm)
    if b_pad != B:
        x = jnp.pad(x, ((0, b_pad - B), (0, 0)))
    grid = (b_pad // bm,)

    itemsize = jnp.dtype(w_packed.dtype).itemsize
    cost = pl.CostEstimate(
        flops=2 * b_pad * IN_DIM * PAD,
        transcendentals=0,
        bytes_accessed=(b_pad * IN_DIM * itemsize          # x
                        + IN_DIM * PAD * itemsize          # packed weights
                        + PAD * 4                          # bias
                        + b_pad * PAD * 4),                # output
    )

    out = pl.pallas_call(
        _new_fc_kernel,
        out_shape=jax.ShapeDtypeStruct((b_pad, PAD), jnp.float32),
        grid_spec=pltpu.PrefetchScalarGridSpec(
            num_scalar_prefetch=0,
            grid=grid,
            in_specs=[
                pl.BlockSpec((bm, IN_DIM), lambda i: (i, 0)),   # x block
                pl.BlockSpec((IN_DIM, PAD), lambda i: (0, 0)),  # weights: resident
                pl.BlockSpec((1, PAD), lambda i: (0, 0)),       # bias: resident
            ],
            out_specs=pl.BlockSpec((bm, PAD), lambda i: (i, 0)),
        ),
        compiler_params=pltpu.CompilerParams(
            dimension_semantics=("parallel",),
            vmem_limit_bytes=24 << 20,   # fits v5e/v6e/v7x (64 MiB physical on v7x)
        ),
        cost_estimate=cost,
    )(x, w_packed, b_packed)

    x1 = out[:B, 0:OUT1]
    x2 = out[:B, OUT1:OUT1 + OUT2]
    return x1, x2


# ----------------------------------------------------------------------------
# Deterministic params mimicking nn.Linear shapes: W (out, in), b (out,).
# ----------------------------------------------------------------------------
def init_params(key):
    def linear(k, out_f, in_f):
        kw, kb = jax.random.split(k)
        bound = 1.0 / jnp.sqrt(in_f)
        w = jax.random.uniform(kw, (out_f, in_f), jnp.float32, -bound, bound)
        b = jax.random.uniform(kb, (out_f,), jnp.float32, -bound, bound)
        return w, b

    k1, k2, k3, k4, k5 = jax.random.split(key, 5)
    return (
        linear(k1, H1, IN_DIM),    # linear1_1: 2560 -> 512
        linear(k2, H2, H1),        # linear1_2: 512  -> 128
        linear(k3, H3, H2),        # linear1_3: 128  -> 128
        linear(k4, OUT2, H3),      # linear1_4: 128  -> 2
        linear(k5, OUT1, IN_DIM),  # linear2:   2560 -> 1
    )


def reference_forward(x, params):
    (w1, b1), (w2, b2), (w3, b3), (w4, b4), (wl2, bl2) = params
    x1 = x @ wl2.T + bl2
    h = x @ w1.T + b1
    h = h @ w2.T + b2
    h = h @ w3.T + b3
    x2 = h @ w4.T + b4
    return x1, x2


if __name__ == "__main__":
    key = jax.random.PRNGKey(0)
    kx, kp = jax.random.split(key)

    B = 4
    x = jax.random.normal(kx, (B, IN_DIM), jnp.float32)
    params = init_params(kp)

    # One-time preprocessing (fold + transpose + pack) — outside the forward path.
    w_packed, b_packed = prepare_params(params, weight_dtype=jnp.float32)
    w_packed, b_packed = jax.block_until_ready((w_packed, b_packed))

    x1, x2 = new_fc_forward(x, w_packed, b_packed)
    jax.block_until_ready((x1, x2))

    r1, r2 = reference_forward(x, params)
    assert x1.shape == (B, OUT1) and x2.shape == (B, OUT2)
    assert jnp.allclose(x1, r1, atol=1e-4, rtol=1e-4)
    assert jnp.allclose(x2, r2, atol=1e-4, rtol=1e-4)

    print("KERNEL_OK")
</pallas_src>

<mosaic_0001>
module attributes {stable_mosaic.version = 11 : i64} {
  func.func @_new_fc_kernel(%arg0: i32, %arg1: memref<8x2560xf32, #tpu.memory_space<vmem>>, %arg2: memref<2560x128xf32, #tpu.memory_space<vmem>>, %arg3: memref<1x128xf32, #tpu.memory_space<vmem>>, %arg4: memref<8x128xf32, #tpu.memory_space<vmem>>) attributes {dimension_semantics = [#tpu.dimension_semantics<parallel>], iteration_bounds = array<i64: 1>, scalar_prefetch = 0 : i64, scratch_operands = 0 : i64, tpu.core_type = #tpu.core_type<tc>, window_params = [{transform_indices = @transform_0, window_bounds = array<i64: 8, 2560>}, {pipeline_mode = #tpu.pipeline_mode<synchronous>, transform_indices = @transform_1, window_bounds = array<i64: 2560, 128>}, {pipeline_mode = #tpu.pipeline_mode<synchronous>, transform_indices = @transform_2, window_bounds = array<i64: 1, 128>}, {transform_indices = @transform_3, window_bounds = array<i64: 8, 128>}]} {
    %c0 = arith.constant 0 : index
    %c0_0 = arith.constant 0 : index
    %0 = vector.load %arg1[%c0, %c0_0] : memref<8x2560xf32, #tpu.memory_space<vmem>>, vector<8x2560xf32>
    %c0_1 = arith.constant 0 : index
    %c0_2 = arith.constant 0 : index
    %1 = vector.load %arg2[%c0_1, %c0_2] : memref<2560x128xf32, #tpu.memory_space<vmem>>, vector<2560x128xf32>
    %cst = arith.constant dense<0.000000e+00> : vector<8x128xf32>
    %2 = tpu.matmul %0, %1, %cst {dimension_numbers = #tpu.dot_dimension_numbers<[1], [0], [0], [1], [0, 0, 1, 1], [], []>} : vector<8x2560xf32>, vector<2560x128xf32>, vector<8x128xf32> -> vector<8x128xf32>
    %c0_3 = arith.constant 0 : index
    %c0_4 = arith.constant 0 : index
    %3 = vector.load %arg3[%c0_3, %c0_4] : memref<1x128xf32, #tpu.memory_space<vmem>>, vector<1x128xf32>
    %4 = vector.broadcast %3 : vector<1x128xf32> to vector<8x128xf32>
    %5 = arith.addf %2, %4 : vector<8x128xf32>
    %c0_5 = arith.constant 0 : index
    %c0_6 = arith.constant 0 : index
    %6 = vector.load %arg4[%c0_5, %c0_6] : memref<8x128xf32, #tpu.memory_space<vmem>>, vector<8x128xf32>
    tpu.vector_store %arg4[%c0_5, %c0_6], %5 {strides = array<i32>} : memref<8x128xf32, #tpu.memory_space<vmem>>, vector<8x128xf32>,
    return
  }
  func.func @transform_0(%arg0: i32) -> (i32, i32) {
    %c0_i32 = arith.constant 0 : i32
    %c0_i32_0 = arith.constant 0 : i32
    return %arg0, %c0_i32 : i32, i32
  }
  func.func @transform_1(%arg0: i32) -> (i32, i32) {
    %c0_i32 = arith.constant 0 : i32
    %c0_i32_0 = arith.constant 0 : i32
    %c0_i32_1 = arith.constant 0 : i32
    return %c0_i32, %c0_i32_0 : i32, i32
  }
  func.func @transform_2(%arg0: i32) -> (i32, i32) {
    %c0_i32 = arith.constant 0 : i32
    %c0_i32_0 = arith.constant 0 : i32
    %c0_i32_1 = arith.constant 0 : i32
    return %c0_i32, %c0_i32_0 : i32, i32
  }
  func.func @transform_3(%arg0: i32) -> (i32, i32) {
    %c0_i32 = arith.constant 0 : i32
    %c0_i32_0 = arith.constant 0 : i32
    return %arg0, %c0_i32 : i32, i32
  }
}

</mosaic_0001>

<llo_original>
// kernel: new_fc_forward.1
$region0: #{new_fc_forward.1}
  #allocation0 [shape = 'u32[]', space=smem, size = 0x4, offset = 0x4, fixed_abs, tag = 'smem constant byte address 0x4 - core index']
  #allocation1 [shape = 'u32[144,128]{1,0:T(1,128)}', space=vmem, size = 0x12000, scoped, tag = 'internal scratch']
  %s0 = inlined_call_operand.vmem [shape: f32[8,2560], index: 0, kind: input, shape index: {}]
  %s1 = inlined_call_operand.hbm [shape: f32[2560,128], index: 1, kind: input, shape index: {}]
  %s2 = inlined_call_operand.hbm [shape: f32[1,128], index: 2, kind: input, shape index: {}]
  %s3 = inlined_call_operand.vmem [shape: f32[8,128], index: 3, kind: output, shape index: {}]
  %s4 = sld [smem:[#allocation0]]
  $region30: #{new_fc_forward.1} parent=0
    _
  %s6 = ssub.s32 1, %s4
  %s7 = scalar_select 0, %s6, %s4
  $region1: #{new_fc_forward.1} parent=0
    #allocation2 [shape = 'u8[1310720]{0}', space=vmem, size = 0x140000, scoped, tag = 'input window, operand 1, single buffered']
    #allocation3 [shape = 's32[1]{0}', space=sflag, size = 0x4, scoped, tag = 'scoped memory for new_fc_forward.1']
    #allocation4 [shape = 'u8[512]{0}', space=vmem, size = 0x400, scoped, tag = 'input window, operand 2, single buffered']
    #allocation5 [shape = 's32[1]{0}', space=sflag, size = 0x4, scoped, tag = 'scoped memory for new_fc_forward.1']
    %8 = vsyncpa [#allocation3], 0
    %9 = vsyncpa [#allocation5], 0
    // Predicated region
    $region2: #{new_fc_forward.1} parent=1 // pred_check
      _
    $region3: #{new_fc_forward.1} parent=1 // pred_check_branch
      %11 = sbr.rel (0) target = $region5
    $region4: #{new_fc_forward.1} parent=1 // pred_region
      _
    $region5: #{new_fc_forward.1} parent=1 // pred_fallthru
      _
    // Predicated region
    $region6: #{new_fc_forward.1} parent=1 // pred_check
      _
    $region7: #{new_fc_forward.1} parent=1 // pred_check_branch
      %13 = sbr.rel (0) target = $region9
    $region8: #{new_fc_forward.1} parent=1 // pred_region
      %s15 = ssub.s32 40960, 40960
      %16 = vsyncadd [#allocation3], %s15
      %s17 = sshll.u32 [#allocation2], 4
      %s18 = int_to_ptr.vmem [resolvable:$true] %s17
      %23 = dma.hbm_to_vmem [thread:$0]  %s1, 40960, %s18, [#allocation3], 128, 128, 8
    $region9: #{new_fc_forward.1} parent=1 // pred_fallthru
      _
    // Predicated region
    $region10: #{new_fc_forward.1} parent=1 // pred_check
      _
    $region11: #{new_fc_forward.1} parent=1 // pred_check_branch
      %25 = sbr.rel (0) target = $region13
    $region12: #{new_fc_forward.1} parent=1 // pred_region
      %s27 = ssub.s32 16, 16
      %28 = vsyncadd [#allocation5], %s27
      %s30 = sshll.u32 [#allocation4], 4
      %s31 = int_to_ptr.vmem [resolvable:$true] %s30
      %33 = dma.hbm_to_vmem [thread:$0]  %s2, 16, %s31, [#allocation5]
    $region13: #{new_fc_forward.1} parent=1 // pred_fallthru
      _
    // Predicated region
    $region14: #{new_fc_forward.1} parent=1 // pred_check
      _
    $region15: #{new_fc_forward.1} parent=1 // pred_check_branch
      %35 = sbr.rel (0) target = $region17
    $region16: #{new_fc_forward.1} parent=1 // pred_region
      %36 = dma.done [#allocation3], 40960
    $region17: #{new_fc_forward.1} parent=1 // pred_fallthru
      _
    // Predicated region
    $region18: #{new_fc_forward.1} parent=1 // pred_check
      _
    $region19: #{new_fc_forward.1} parent=1 // pred_check_branch
      %38 = sbr.rel (0) target = $region21
    $region20: #{new_fc_forward.1} parent=1 // pred_region
      %39 = dma.done [#allocation5], 16
    $region21: #{new_fc_forward.1} parent=1 // pred_fallthru
      _
    %v40 = vld [vmem:[%s0] sm:$0xff]
    %v41 = vld [vmem:[%s0 + $0x8] sm:$0xff]
    %v42 = vld [vmem:[%s0 + $0x10] sm:$0xff]
    %v43 = vld [vmem:[%s0 + $0x18] sm:$0xff]
    %v44 = vld [vmem:[%s0 + $0x20] sm:$0xff]
    %v45 = vld [vmem:[%s0 + $0x28] sm:$0xff]
    %v46 = vld [vmem:[%s0 + $0x30] sm:$0xff]
    %v47 = vld [vmem:[%s0 + $0x38] sm:$0xff]
    %v48 = vld [vmem:[%s0 + $0x40] sm:$0xff]
    %v49 = vld [vmem:[%s0 + $0x48] sm:$0xff]
    %v50 = vld [vmem:[%s0 + $0x50] sm:$0xff]
    %v51 = vld [vmem:[%s0 + $0x58] sm:$0xff]
    %v52 = vld [vmem:[%s0 + $0x60] sm:$0xff]
    %v53 = vld [vmem:[%s0 + $0x68] sm:$0xff]
    %v54 = vld [vmem:[%s0 + $0x70] sm:$0xff]
    %v55 = vld [vmem:[%s0 + $0x78] sm:$0xff]
    %v56 = vld [vmem:[%s0 + $0x80] sm:$0xff]
    %v57 = vld [vmem:[%s0 + $0x88] sm:$0xff]
    %v58 = vld [vmem:[%s0 + $0x90] sm:$0xff]
    %v59 = vld [vmem:[%s0 + $0x98] sm:$0xff]
    %v60 = vld [vmem:[#allocation2] sm:$0xff]
    %v61 = vld [vmem:[#allocation2 + $0x8] sm:$0xff]
    %v62 = vld [vmem:[#allocation2 + $0x10] sm:$0xff]
    %v63 = vld [vmem:[#allocation2 + $0x18] sm:$0xff]
    %v64 = vld [vmem:[#allocation2 + $0x20] sm:$0xff]
    %v65 = vld [vmem:[#allocation2 + $0x28] sm:$0xff]
    %v66 = vld [vmem:[#allocation2 + $0x30] sm:$0xff]
    %v67 = vld [vmem:[#allocation2 + $0x38] sm:$0xff]
    %v68 = vld [vmem:[#allocation2 + $0x40] sm:$0xff]
    %v69 = vld [vmem:[#allocation2 + $0x48] sm:$0xff]
    %v70 = vld [vmem:[#allocation2 + $0x50] sm:$0xff]
    %v71 = vld [vmem:[#allocation2 + $0x58] sm:$0xff]
    %v72 = vld [vmem:[#allocation2 + $0x60] sm:$0xff]
    %v73 = vld [vmem:[#allocation2 + $0x68] sm:$0xff]
    %v74 = vld [vmem:[#allocation2 + $0x70] sm:$0xff]
    %v75 = vld [vmem:[#allocation2 + $0x78] sm:$0xff]
    %v76 = vld [vmem:[#allocation2 + $0x80] sm:$0xff]
    %v77 = vld [vmem:[#allocation2 + $0x88] sm:$0xff]
    %v78 = vld [vmem:[#allocation2 + $0x90] sm:$0xff]
    %v79 = vld [vmem:[#allocation2 + $0x98] sm:$0xff]
    %v80 = vld [vmem:[#allocation2 + $0xa0] sm:$0xff]
    %v81 = vld [vmem:[#allocation2 + $0xa8] sm:$0xff]
    %v82 = vld [vmem:[#allocation2 + $0xb0] sm:$0xff]
    %v83 = vld [vmem:[#allocation2 + $0xb8] sm:$0xff]
    %v84 = vld [vmem:[#allocation2 + $0xc0] sm:$0xff]
    %v85 = vld [vmem:[#allocation2 + $0xc8] sm:$0xff]
    %v86 = vld [vmem:[#allocation2 + $0xd0] sm:$0xff]
    %v87 = vld [vmem:[#allocation2 + $0xd8] sm:$0xff]
    %v88 = vld [vmem:[#allocation2 + $0xe0] sm:$0xff]
    %v89 = vld [vmem:[#allocation2 + $0xe8] sm:$0xff]
    %v90 = vld [vmem:[#allocation2 + $0xf0] sm:$0xff]
    %v91 = vld [vmem:[#allocation2 + $0xf8] sm:$0xff]
    %v92 = vld [vmem:[#allocation2 + $0x100] sm:$0xff]
    %v93 = vld [vmem:[#allocation2 + $0x108] sm:$0xff]
    %v94 = vld [vmem:[#allocation2 + $0x110] sm:$0xff]
    %v95 = vld [vmem:[#allocation2 + $0x118] sm:$0xff]
    %v96 = vld [vmem:[#allocation2 + $0x120] sm:$0xff]
    %v97 = vld [vmem:[#allocation2 + $0x128] sm:$0xff]
    %v98 = vld [vmem:[#allocation2 + $0x130] sm:$0xff]
    %v99 = vld [vmem:[#allocation2 + $0x138] sm:$0xff]
    %v100 = vld [vmem:[#allocation2 + $0x140] sm:$0xff]
    %v101 = vld [vmem:[#allocation2 + $0x148] sm:$0xff]
    %v102 = vld [vmem:[#allocation2 + $0x150] sm:$0xff]
    %v103 = vld [vmem:[#allocation2 + $0x158] sm:$0xff]
    %v104 = vld [vmem:[#allocation2 + $0x160] sm:$0xff]
    %v105 = vld [vmem:[#allocation2 + $0x168] sm:$0xff]
    %v106 = vld [vmem:[#allocation2 + $0x170] sm:$0xff]
    %v107 = vld [vmem:[#allocation2 + $0x178] sm:$0xff]
    %v108 = vld [vmem:[#allocation2 + $0x180] sm:$0xff]
    %v109 = vld [vmem:[#allocation2 + $0x188] sm:$0xff]
    %v110 = vld [vmem:[#allocation2 + $0x190] sm:$0xff]
    %v111 = vld [vmem:[#allocation2 + $0x198] sm:$0xff]
    %v112 = vld [vmem:[#allocation2 + $0x1a0] sm:$0xff]
    %v113 = vld [vmem:[#allocation2 + $0x1a8] sm:$0xff]
    %v114 = vld [vmem:[#allocation2 + $0x1b0] sm:$0xff]
    %v115 = vld [vmem:[#allocation2 + $0x1b8] sm:$0xff]
    %v116 = vld [vmem:[#allocation2 + $0x1c0] sm:$0xff]
    %v117 = vld [vmem:[#allocation2 + $0x1c8] sm:$0xff]
    %v118 = vld [vmem:[#allocation2 + $0x1d0] sm:$0xff]
    %v119 = vld [vmem:[#allocation2 + $0x1d8] sm:$0xff]
    %v120 = vld [vmem:[#allocation2 + $0x1e0] sm:$0xff]
    %v121 = vld [vmem:[#allocation2 + $0x1e8] sm:$0xff]
    %v122 = vld [vmem:[#allocation2 + $0x1f0] sm:$0xff]
    %v123 = vld [vmem:[#allocation2 + $0x1f8] sm:$0xff]
    %v124 = vld [vmem:[#allocation2 + $0x200] sm:$0xff]
    %v125 = vld [vmem:[#allocation2 + $0x208] sm:$0xff]
    %v126 = vld [vmem:[#allocation2 + $0x210] sm:$0xff]
    %v127 = vld [vmem:[#allocation2 + $0x218] sm:$0xff]
    %v128 = vld [vmem:[#allocation2 + $0x220] sm:$0xff]
    %v129 = vld [vmem:[#allocation2 + $0x228] sm:$0xff]
    %v130 = vld [vmem:[#allocation2 + $0x230] sm:$0xff]
    %v131 = vld [vmem:[#allocation2 + $0x238] sm:$0xff]
    %v132 = vld [vmem:[#allocation2 + $0x240] sm:$0xff]
    %v133 = vld [vmem:[#allocation2 + $0x248] sm:$0xff]
    %v134 = vld [vmem:[#allocation2 + $0x250] sm:$0xff]
    %v135 = vld [vmem:[#allocation2 + $0x258] sm:$0xff]
    %v136 = vld [vmem:[#allocation2 + $0x260] sm:$0xff]
    %v137 = vld [vmem:[#allocation2 + $0x268] sm:$0xff]
    %v138 = vld [vmem:[#allocation2 + $0x270] sm:$0xff]
    %v139 = vld [vmem:[#allocation2 + $0x278] sm:$0xff]
    %v140 = vld [vmem:[#allocation2 + $0x280] sm:$0xff]
    %v141 = vld [vmem:[#allocation2 + $0x288] sm:$0xff]
    %v142 = vld [vmem:[#allocation2 + $0x290] sm:$0xff]
    %v143 = vld [vmem:[#allocation2 + $0x298] sm:$0xff]
    %v144 = vld [vmem:[#allocation2 + $0x2a0] sm:$0xff]
    %v145 = vld [vmem:[#allocation2 + $0x2a8] sm:$0xff]
    %v146 = vld [vmem:[#allocation2 + $0x2b0] sm:$0xff]
    %v147 = vld [vmem:[#allocation2 + $0x2b8] sm:$0xff]
    %v148 = vld [vmem:[#allocation2 + $0x2c0] sm:$0xff]
    %v149 = vld [vmem:[#allocation2 + $0x2c8] sm:$0xff]
    %v150 = vld [vmem:[#allocation2 + $0x2d0] sm:$0xff]
    %v151 = vld [vmem:[#allocation2 + $0x2d8] sm:$0xff]
    %v152 = vld [vmem:[#allocation2 + $0x2e0] sm:$0xff]
    %v153 = vld [vmem:[#allocation2 + $0x2e8] sm:$0xff]
    %v154 = vld [vmem:[#allocation2 + $0x2f0] sm:$0xff]
    %v155 = vld [vmem:[#allocation2 + $0x2f8] sm:$0xff]
    %v156 = vld [vmem:[#allocation2 + $0x300] sm:$0xff]
    %v157 = vld [vmem:[#allocation2 + $0x308] sm:$0xff]
    %v158 = vld [vmem:[#allocation2 + $0x310] sm:$0xff]
    %v159 = vld [vmem:[#allocation2 + $0x318] sm:$0xff]
    %v160 = vld [vmem:[#allocation2 + $0x320] sm:$0xff]
    %v161 = vld [vmem:[#allocation2 + $0x328] sm:$0xff]
    %v162 = vld [vmem:[#allocation2 + $0x330] sm:$0xff]
    %v163 = vld [vmem:[#allocation2 + $0x338] sm:$0xff]
    %v164 = vld [vmem:[#allocation2 + $0x340] sm:$0xff]
    %v165 = vld [vmem:[#allocation2 + $0x348] sm:$0xff]
    %v166 = vld [vmem:[#allocation2 + $0x350] sm:$0xff]
    %v167 = vld [vmem:[#allocation2 + $0x358] sm:$0xff]
    %v168 = vld [vmem:[#allocation2 + $0x360] sm:$0xff]
    %v169 = vld [vmem:[#allocation2 + $0x368] sm:$0xff]
    %v170 = vld [vmem:[#allocation2 + $0x370] sm:$0xff]
    %v171 = vld [vmem:[#allocation2 + $0x378] sm:$0xff]
    %v172 = vld [vmem:[#allocation2 + $0x380] sm:$0xff]
    %v173 = vld [vmem:[#allocation2 + $0x388] sm:$0xff]
    %v174 = vld [vmem:[#allocation2 + $0x390] sm:$0xff]
    %v175 = vld [vmem:[#allocation2 + $0x398] sm:$0xff]
    %v176 = vld [vmem:[#allocation2 + $0x3a0] sm:$0xff]
    %v177 = vld [vmem:[#allocation2 + $0x3a8] sm:$0xff]
    %v178 = vld [vmem:[#allocation2 + $0x3b0] sm:$0xff]
    %v179 = vld [vmem:[#allocation2 + $0x3b8] sm:$0xff]
    %v180 = vld [vmem:[#allocation2 + $0x3c0] sm:$0xff]
    %v181 = vld [vmem:[#allocation2 + $0x3c8] sm:$0xff]
    %v182 = vld [vmem:[#allocation2 + $0x3d0] sm:$0xff]
    %v183 = vld [vmem:[#allocation2 + $0x3d8] sm:$0xff]
    %v184 = vld [vmem:[#allocation2 + $0x3e0] sm:$0xff]
    %v185 = vld [vmem:[#allocation2 + $0x3e8] sm:$0xff]
    %v186 = vld [vmem:[#allocation2 + $0x3f0] sm:$0xff]
    %v187 = vld [vmem:[#allocation2 + $0x3f8] sm:$0xff]
    %v188 = vld [vmem:[#allocation2 + $0x400] sm:$0xff]
    %v189 = vld [vmem:[#allocation2 + $0x408] sm:$0xff]
    %v190 = vld [vmem:[#allocation2 + $0x410] sm:$0xff]
    %v191 = vld [vmem:[#allocation2 + $0x418] sm:$0xff]
    %v192 = vld [vmem:[#allocation2 + $0x420] sm:$0xff]
    %v193 = vld [vmem:[#allocation2 + $0x428] sm:$0xff]
    %v194 = vld [vmem:[#allocation2 + $0x430] sm:$0xff]
    %v195 = vld [vmem:[#allocation2 + $0x438] sm:$0xff]
    %v196 = vld [vmem:[#allocation2 + $0x440] sm:$0xff]
    %v197 = vld [vmem:[#allocation2 + $0x448] sm:$0xff]
    %v198 = vld [vmem:[#allocation2 + $0x450] sm:$0xff]
    %v199 = vld [vmem:[#allocation2 + $0x458] sm:$0xff]
    %v200 = vld [vmem:[#allocation2 + $0x460] sm:$0xff]
    %v201 = vld [vmem:[#allocation2 + $0x468] sm:$0xff]
    %v202 = vld [vmem:[#allocation2 + $0x470] sm:$0xff]
    %v203 = vld [vmem:[#allocation2 + $0x478] sm:$0xff]
    %v204 = vld [vmem:[#allocation2 + $0x480] sm:$0xff]
    %v205 = vld [vmem:[#allocation2 + $0x488] sm:$0xff]
    %v206 = vld [vmem:[#allocation2 + $0x490] sm:$0xff]
    %v207 = vld [vmem:[#allocation2 + $0x498] sm:$0xff]
    %v208 = vld [vmem:[#allocation2 + $0x4a0] sm:$0xff]
    %v209 = vld [vmem:[#allocation2 + $0x4a8] sm:$0xff]
    %v210 = vld [vmem:[#allocation2 + $0x4b0] sm:$0xff]
    %v211 = vld [vmem:[#allocation2 + $0x4b8] sm:$0xff]
    %v212 = vld [vmem:[#allocation2 + $0x4c0] sm:$0xff]
    %v213 = vld [vmem:[#allocation2 + $0x4c8] sm:$0xff]
    %v214 = vld [vmem:[#allocation2 + $0x4d0] sm:$0xff]
    %v215 = vld [vmem:[#allocation2 + $0x4d8] sm:$0xff]
    %v216 = vld [vmem:[#allocation2 + $0x4e0] sm:$0xff]
    %v217 = vld [vmem:[#allocation2 + $0x4e8] sm:$0xff]
    %v218 = vld [vmem:[#allocation2 + $0x4f0] sm:$0xff]
    %v219 = vld [vmem:[#allocation2 + $0x4f8] sm:$0xff]
    %v220 = vld [vmem:[#allocation2 + $0x500] sm:$0xff]
    %v221 = vld [vmem:[#allocation2 + $0x508] sm:$0xff]
    %v222 = vld [vmem:[#allocation2 + $0x510] sm:$0xff]
    %v223 = vld [vmem:[#allocation2 + $0x518] sm:$0xff]
    %v224 = vld [vmem:[#allocation2 + $0x520] sm:$0xff]
    %v225 = vld [vmem:[#allocation2 + $0x528] sm:$0xff]
    %v226 = vld [vmem:[#allocation2 + $0x530] sm:$0xff]
    %v227 = vld [vmem:[#allocation2 + $0x538] sm:$0xff]
    %v228 = vld [vmem:[#allocation2 + $0x540] sm:$0xff]
    %v229 = vld [vmem:[#allocation2 + $0x548] sm:$0xff]
    %v230 = vld [vmem:[#allocation2 + $0x550] sm:$0xff]
    %v231 = vld [vmem:[#allocation2 + $0x558] sm:$0xff]
    %v232 = vld [vmem:[#allocation2 + $0x560] sm:$0xff]
    %v233 = vld [vmem:[#allocation2 + $0x568] sm:$0xff]
    %v234 = vld [vmem:[#allocation2 + $0x570] sm:$0xff]
    %v235 = vld [vmem:[#allocation2 + $0x578] sm:$0xff]
    %v236 = vld [vmem:[#allocation2 + $0x580] sm:$0xff]
    %v237 = vld [vmem:[#allocation2 + $0x588] sm:$0xff]
    %v238 = vld [vmem:[#allocation2 + $0x590] sm:$0xff]
    %v239 = vld [vmem:[#allocation2 + $0x598] sm:$0xff]
    %v240 = vld [vmem:[#allocation2 + $0x5a0] sm:$0xff]
    %v241 = vld [vmem:[#allocation2 + $0x5a8] sm:$0xff]
    %v242 = vld [vmem:[#allocation2 + $0x5b0] sm:$0xff]
    %v243 = vld [vmem:[#allocation2 + $0x5b8] sm:$0xff]
    %v244 = vld [vmem:[#allocation2 + $0x5c0] sm:$0xff]
    %v245 = vld [vmem:[#allocation2 + $0x5c8] sm:$0xff]
    %v246 = vld [vmem:[#allocation2 + $0x5d0] sm:$0xff]
    %v247 = vld [vmem:[#allocation2 + $0x5d8] sm:$0xff]
    %v248 = vld [vmem:[#allocation2 + $0x5e0] sm:$0xff]
    %v249 = vld [vmem:[#allocation2 + $0x5e8] sm:$0xff]
    %v250 = vld [vmem:[#allocation2 + $0x5f0] sm:$0xff]
    %v251 = vld [vmem:[#allocation2 + $0x5f8] sm:$0xff]
    %v252 = vld [vmem:[#allocation2 + $0x600] sm:$0xff]
    %v253 = vld [vmem:[#allocation2 + $0x608] sm:$0xff]
    %v254 = vld [vmem:[#allocation2 + $0x610] sm:$0xff]
    %v255 = vld [vmem:[#allocation2 + $0x618] sm:$0xff]
    %v256 = vld [vmem:[#allocation2 + $0x620] sm:$0xff]
    %v257 = vld [vmem:[#allocation2 + $0x628] sm:$0xff]
    %v258 = vld [vmem:[#allocation2 + $0x630] sm:$0xff]
    %v259 = vld [vmem:[#allocation2 + $0x638] sm:$0xff]
    %v260 = vld [vmem:[#allocation2 + $0x640] sm:$0xff]
    %v261 = vld [vmem:[#allocation2 + $0x648] sm:$0xff]
    %v262 = vld [vmem:[#allocation2 + $0x650] sm:$0xff]
    %v263 = vld [vmem:[#allocation2 + $0x658] sm:$0xff]
    %v264 = vld [vmem:[#allocation2 + $0x660] sm:$0xff]
    %v265 = vld [vmem:[#allocation2 + $0x668] sm:$0xff]
    %v266 = vld [vmem:[#allocation2 + $0x670] sm:$0xff]
    %v267 = vld [vmem:[#allocation2 + $0x678] sm:$0xff]
    %v268 = vld [vmem:[#allocation2 + $0x680] sm:$0xff]
    %v269 = vld [vmem:[#allocation2 + $0x688] sm:$0xff]
    %v270 = vld [vmem:[#allocation2 + $0x690] sm:$0xff]
    %v271 = vld [vmem:[#allocation2 + $0x698] sm:$0xff]
    %v272 = vld [vmem:[#allocation2 + $0x6a0] sm:$0xff]
    %v273 = vld [vmem:[#allocation2 + $0x6a8] sm:$0xff]
    %v274 = vld [vmem:[#allocation2 + $0x6b0] sm:$0xff]
    %v275 = vld [vmem:[#allocation2 + $0x6b8] sm:$0xff]
    %v276 = vld [vmem:[#allocation2 + $0x6c0] sm:$0xff]
    %v277 = vld [vmem:[#allocation2 + $0x6c8] sm:$0xff]
    %v278 = vld [vmem:[#allocation2 + $0x6d0] sm:$0xff]
    %v279 = vld [vmem:[#allocation2 + $0x6d8] sm:$0xff]
    %v280 = vld [vmem:[#allocation2 + $0x6e0] sm:$0xff]
    %v281 = vld [vmem:[#allocation2 + $0x6e8] sm:$0xff]
    %v282 = vld [vmem:[#allocation2 + $0x6f0] sm:$0xff]
    %v283 = vld [vmem:[#allocation2 + $0x6f8] sm:$0xff]
    %v284 = vld [vmem:[#allocation2 + $0x700] sm:$0xff]
    %v285 = vld [vmem:[#allocation2 + $0x708] sm:$0xff]
    %v286 = vld [vmem:[#allocation2 + $0x710] sm:$0xff]
    %v287 = vld [vmem:[#allocation2 + $0x718] sm:$0xff]
    %v288 = vld [vmem:[#allocation2 + $0x720] sm:$0xff]
    %v289 = vld [vmem:[#allocation2 + $0x728] sm:$0xff]
    %v290 = vld [vmem:[#allocation2 + $0x730] sm:$0xff]
    %v291 = vld [vmem:[#allocation2 + $0x738] sm:$0xff]
    %v292 = vld [vmem:[#allocation2 + $0x740] sm:$0xff]
    %v293 = vld [vmem:[#allocation2 + $0x748] sm:$0xff]
    %v294 = vld [vmem:[#allocation2 + $0x750] sm:$0xff]
    %v295 = vld [vmem:[#allocation2 + $0x758] sm:$0xff]
    %v296 = vld [vmem:[#allocation2 + $0x760] sm:$0xff]
    %v297 = vld [vmem:[#allocation2 + $0x768] sm:$0xff]
    %v298 = vld [vmem:[#allocation2 + $0x770] sm:$0xff]
    %v299 = vld [vmem:[#allocation2 + $0x778] sm:$0xff]
    %v300 = vld [vmem:[#allocation2 + $0x780] sm:$0xff]
    %v301 = vld [vmem:[#allocation2 + $0x788] sm:$0xff]
    %v302 = vld [vmem:[#allocation2 + $0x790] sm:$0xff]
    %v303 = vld [vmem:[#allocation2 + $0x798] sm:$0xff]
    %v304 = vld [vmem:[#allocation2 + $0x7a0] sm:$0xff]
    %v305 = vld [vmem:[#allocation2 + $0x7a8] sm:$0xff]
    %v306 = vld [vmem:[#allocation2 + $0x7b0] sm:$0xff]
    %v307 = vld [vmem:[#allocation2 + $0x7b8] sm:$0xff]
    %v308 = vld [vmem:[#allocation2 + $0x7c0] sm:$0xff]
    %v309 = vld [vmem:[#allocation2 + $0x7c8] sm:$0xff]
    %v310 = vld [vmem:[#allocation2 + $0x7d0] sm:$0xff]
    %v311 = vld [vmem:[#allocation2 + $0x7d8] sm:$0xff]
    %v312 = vld [vmem:[#allocation2 + $0x7e0] sm:$0xff]
    %v313 = vld [vmem:[#allocation2 + $0x7e8] sm:$0xff]
    %v314 = vld [vmem:[#allocation2 + $0x7f0] sm:$0xff]
    %v315 = vld [vmem:[#allocation2 + $0x7f8] sm:$0xff]
    %v316 = vld [vmem:[#allocation2 + $0x800] sm:$0xff]
    %v317 = vld [vmem:[#allocation2 + $0x808] sm:$0xff]
    %v318 = vld [vmem:[#allocation2 + $0x810] sm:$0xff]
    %v319 = vld [vmem:[#allocation2 + $0x818] sm:$0xff]
    %v320 = vld [vmem:[#allocation2 + $0x820] sm:$0xff]
    %v321 = vld [vmem:[#allocation2 + $0x828] sm:$0xff]
    %v322 = vld [vmem:[#allocation2 + $0x830] sm:$0xff]
    %v323 = vld [vmem:[#allocation2 + $0x838] sm:$0xff]
    %v324 = vld [vmem:[#allocation2 + $0x840] sm:$0xff]
    %v325 = vld [vmem:[#allocation2 + $0x848] sm:$0xff]
    %v326 = vld [vmem:[#allocation2 + $0x850] sm:$0xff]
    %v327 = vld [vmem:[#allocation2 + $0x858] sm:$0xff]
    %v328 = vld [vmem:[#allocation2 + $0x860] sm:$0xff]
    %v329 = vld [vmem:[#allocation2 + $0x868] sm:$0xff]
    %v330 = vld [vmem:[#allocation2 + $0x870] sm:$0xff]
    %v331 = vld [vmem:[#allocation2 + $0x878] sm:$0xff]
    %v332 = vld [vmem:[#allocation2 + $0x880] sm:$0xff]
    %v333 = vld [vmem:[#allocation2 + $0x888] sm:$0xff]
    %v334 = vld [vmem:[#allocation2 + $0x890] sm:$0xff]
    %v335 = vld [vmem:[#allocation2 + $0x898] sm:$0xff]
    %v336 = vld [vmem:[#allocation2 + $0x8a0] sm:$0xff]
    %v337 = vld [vmem:[#allocation2 + $0x8a8] sm:$0xff]
    %v338 = vld [vmem:[#allocation2 + $0x8b0] sm:$0xff]
    %v339 = vld [vmem:[#allocation2 + $0x8b8] sm:$0xff]
    %v340 = vld [vmem:[#allocation2 + $0x8c0] sm:$0xff]
    %v341 = vld [vmem:[#allocation2 + $0x8c8] sm:$0xff]
    %v342 = vld [vmem:[#allocation2 + $0x8d0] sm:$0xff]
    %v343 = vld [vmem:[#allocation2 + $0x8d8] sm:$0xff]
    %v344 = vld [vmem:[#allocation2 + $0x8e0] sm:$0xff]
    %v345 = vld [vmem:[#allocation2 + $0x8e8] sm:$0xff]
    %v346 = vld [vmem:[#allocation2 + $0x8f0] sm:$0xff]
    %v347 = vld [vmem:[#allocation2 + $0x8f8] sm:$0xff]
    %v348 = vld [vmem:[#allocation2 + $0x900] sm:$0xff]
    %v349 = vld [vmem:[#allocation2 + $0x908] sm:$0xff]
    %v350 = vld [vmem:[#allocation2 + $0x910] sm:$0xff]
    %v351 = vld [vmem:[#allocation2 + $0x918] sm:$0xff]
    %v352 = vld [vmem:[#allocation2 + $0x920] sm:$0xff]
    %v353 = vld [vmem:[#allocation2 + $0x928] sm:$0xff]
    %v354 = vld [vmem:[#allocation2 + $0x930] sm:$0xff]
    %v355 = vld [vmem:[#allocation2 + $0x938] sm:$0xff]
    %v356 = vld [vmem:[#allocation2 + $0x940] sm:$0xff]
    %v357 = vld [vmem:[#allocation2 + $0x948] sm:$0xff]
    %v358 = vld [vmem:[#allocation2 + $0x950] sm:$0xff]
    %v359 = vld [vmem:[#allocation2 + $0x958] sm:$0xff]
    %v360 = vld [vmem:[#allocation2 + $0x960] sm:$0xff]
    %v361 = vld [vmem:[#allocation2 + $0x968] sm:$0xff]
    %v362 = vld [vmem:[#allocation2 + $0x970] sm:$0xff]
    %v363 = vld [vmem:[#allocation2 + $0x978] sm:$0xff]
    %v364 = vld [vmem:[#allocation2 + $0x980] sm:$0xff]
    %v365 = vld [vmem:[#allocation2 + $0x988] sm:$0xff]
    %v366 = vld [vmem:[#allocation2 + $0x990] sm:$0xff]
    %v367 = vld [vmem:[#allocation2 + $0x998] sm:$0xff]
    %v368 = vld [vmem:[#allocation2 + $0x9a0] sm:$0xff]
    %v369 = vld [vmem:[#allocation2 + $0x9a8] sm:$0xff]
    %v370 = vld [vmem:[#allocation2 + $0x9b0] sm:$0xff]
    %v371 = vld [vmem:[#allocation2 + $0x9b8] sm:$0xff]
    %v372 = vld [vmem:[#allocation2 + $0x9c0] sm:$0xff]
    %v373 = vld [vmem:[#allocation2 + $0x9c8] sm:$0xff]
    %v374 = vld [vmem:[#allocation2 + $0x9d0] sm:$0xff]
    %v375 = vld [vmem:[#allocation2 + $0x9d8] sm:$0xff]
    %v376 = vld [vmem:[#allocation2 + $0x9e0] sm:$0xff]
    %v377 = vld [vmem:[#allocation2 + $0x9e8] sm:$0xff]
    %v378 = vld [vmem:[#allocation2 + $0x9f0] sm:$0xff]
    %v379 = vld [vmem:[#allocation2 + $0x9f8] sm:$0xff]
    %v380 = vld [vmem:[#allocation4] sm:$0x1]
    %v382 = vlaneseq
    %v383 = vshrl.u32 %v382, 7
    %v384 = vsub.s32 0, %v383
    %v385 = vrot.slane %v380, %v384
    %387 = vmatprep.subr.mxu0 0.0
    %388 = vmatpush1.msra.mxu0 %v60
    %389 = vmatprep.subr.mxu0 0.0
    %390 = vmatpush1.msra.mxu0 %v61
    %391 = vmatprep.subr.mxu0 0.0
    %392 = vmatpush1.msra.mxu0 %v62
    %393 = vmatprep.subr.mxu0 0.0
    %394 = vmatpush1.msra.mxu0 %v63
    %395 = vmatprep.subr.mxu0 0.0
    %396 = vmatpush1.msra.mxu0 %v64
    %397 = vmatprep.subr.mxu0 0.0
    %398 = vmatpush1.msra.mxu0 %v65
    %399 = vmatprep.subr.mxu0 0.0
    %400 = vmatpush1.msra.mxu0 %v66
    %401 = vmatprep.subr.mxu0 0.0
    %402 = vmatpush1.msra.mxu0 %v67
    %403 = vmatprep.subr.mxu0 0.0
    %404 = vmatpush1.msra.mxu0 %v68
    %405 = vmatprep.subr.mxu0 0.0
    %406 = vmatpush1.msra.mxu0 %v69
    %407 = vmatprep.subr.mxu0 0.0
    %408 = vmatpush1.msra.mxu0 %v70
    %409 = vmatprep.subr.mxu0 0.0
    %410 = vmatpush1.msra.mxu0 %v71
    %411 = vmatprep.subr.mxu0 0.0
    %412 = vmatpush1.msra.mxu0 %v72
    %413 = vmatprep.subr.mxu0 0.0
    %414 = vmatpush1.msra.mxu0 %v73
    %415 = vmatprep.subr.mxu0 0.0
    %416 = vmatpush1.msra.mxu0 %v74
    %417 = vmatprep.subr.mxu0 0.0
    %418 = vmatpush1.msra.mxu0 %v75
    %419 = vmatprep.subr.mxu0 0.0
    %420 = vmatpush1.msra.mxu0 %v76
    %421 = vmatprep.subr.mxu0 0.0
    %422 = vmatpush1.msra.mxu0 %v77
    %423 = vmatprep.subr.mxu0 0.0
    %424 = vmatpush1.msra.mxu0 %v78
    %425 = vmatprep.subr.mxu0 0.0
    %426 = vmatpush1.msra.mxu0 %v79
    %427 = vmatprep.subr.mxu0 0.0
    %428 = vmatpush1.msra.mxu0 %v80
    %429 = vmatprep.subr.mxu0 0.0
    %430 = vmatpush1.msra.mxu0 %v81
    %431 = vmatprep.subr.mxu0 0.0
    %432 = vmatpush1.msra.mxu0 %v82
    %433 = vmatprep.subr.mxu0 0.0
    %434 = vmatpush1.msra.mxu0 %v83
    %435 = vmatprep.subr.mxu0 0.0
    %436 = vmatpush1.msra.mxu0 %v84
    %437 = vmatprep.subr.mxu0 0.0
    %438 = vmatpush1.msra.mxu0 %v85
    %439 = vmatprep.subr.mxu0 0.0
    %440 = vmatpush1.msra.mxu0 %v86
    %441 = vmatprep.subr.mxu0 0.0
    %442 = vmatpush1.msra.mxu0 %v87
    %443 = vmatprep.subr.mxu0 0.0
    %444 = vmatpush1.msra.mxu0 %v88
    %445 = vmatprep.subr.mxu0 0.0
    %446 = vmatpush1.msra.mxu0 %v89
    %447 = vmatprep.subr.mxu0 0.0
    %448 = vmatpush1.msra.mxu0 %v90
    %449 = vmatprep.subr.mxu0 0.0
    %450 = vmatpush1.msra.mxu0 %v91
    %451 = vmatprep.mubr.f32.mxu0 %v41
    %452 = vmatmul.mubr.f32.gmra.mrb[0].mxu0 %v40
    %v453 = vpop.f32.mrb[0].mxu0
    %v454 = vadd.f32 %v385, %v453
    %v455 = vpop.f32.mrb[0].mxu0
    %456 = vdwg.mxu0
    %457 = vmatprep.subr.mxu0 0.0
    %458 = vmatpush1.msra.mxu0 %v92
    %459 = vmatprep.subr.mxu0 0.0
    %460 = vmatpush1.msra.mxu0 %v93
    %461 = vmatprep.subr.mxu0 0.0
    %462 = vmatpush1.msra.mxu0 %v94
    %463 = vmatprep.subr.mxu0 0.0
    %464 = vmatpush1.msra.mxu0 %v95
    %465 = vmatprep.subr.mxu0 0.0
    %466 = vmatpush1.msra.mxu0 %v96
    %467 = vmatprep.subr.mxu0 0.0
    %468 = vmatpush1.msra.mxu0 %v97
    %469 = vmatprep.subr.mxu0 0.0
    %470 = vmatpush1.msra.mxu0 %v98
    %471 = vmatprep.subr.mxu0 0.0
    %472 = vmatpush1.msra.mxu0 %v99
    %473 = vmatprep.subr.mxu0 0.0
    %474 = vmatpush1.msra.mxu0 %v100
    %475 = vmatprep.subr.mxu0 0.0
    %476 = vmatpush1.msra.mxu0 %v101
    %477 = vmatprep.subr.mxu0 0.0
    %478 = vmatpush1.msra.mxu0 %v102
    %479 = vmatprep.subr.mxu0 0.0
    %480 = vmatpush1.msra.mxu0 %v103
    %481 = vmatprep.subr.mxu0 0.0
    %482 = vmatpush1.msra.mxu0 %v104
    %483 = vmatprep.subr.mxu0 0.0
    %484 = vmatpush1.msra.mxu0 %v105
    %485 = vmatprep.subr.mxu0 0.0
    %486 = vmatpush1.msra.mxu0 %v106
    %487 = vmatprep.subr.mxu0 0.0
    %488 = vmatpush1.msra.mxu0 %v107
    %489 = vmatprep.subr.mxu0 0.0
    %490 = vmatpush1.msra.mxu0 %v108
    %491 = vmatprep.subr.mxu0 0.0
    %492 = vmatpush1.msra.mxu0 %v109
    %493 = vmatprep.subr.mxu0 0.0
    %494 = vmatpush1.msra.mxu0 %v110
    %495 = vmatprep.subr.mxu0 0.0
    %496 = vmatpush1.msra.mxu0 %v111
    %497 = vmatprep.subr.mxu0 0.0
    %498 = vmatpush1.msra.mxu0 %v112
    %499 = vmatprep.subr.mxu0 0.0
    %500 = vmatpush1.msra.mxu0 %v113
    %501 = vmatprep.subr.mxu0 0.0
    %502 = vmatpush1.msra.mxu0 %v114
    %503 = vmatprep.subr.mxu0 0.0
    %504 = vmatpush1.msra.mxu0 %v115
    %505 = vmatprep.subr.mxu0 0.0
    %506 = vmatpush1.msra.mxu0 %v116
    %507 = vmatprep.subr.mxu0 0.0
    %508 = vmatpush1.msra.mxu0 %v117
    %509 = vmatprep.subr.mxu0 0.0
    %510 = vmatpush1.msra.mxu0 %v118
    %511 = vmatprep.subr.mxu0 0.0
    %512 = vmatpush1.msra.mxu0 %v119
    %513 = vmatprep.subr.mxu0 0.0
    %514 = vmatpush1.msra.mxu0 %v120
    %515 = vmatprep.subr.mxu0 0.0
    %516 = vmatpush1.msra.mxu0 %v121
    %517 = vmatprep.subr.mxu0 0.0
    %518 = vmatpush1.msra.mxu0 %v122
    %519 = vmatprep.subr.mxu0 0.0
    %520 = vmatpush1.msra.mxu0 %v123
    %521 = vmatprep.mubr.f32.mxu0 %v43
    %522 = vmatmul.mubr.f32.gmra.mrb[0].mxu0 %v42
    %v523 = vpop.f32.mrb[0].mxu0
    %v524 = vadd.f32 %v454, %v523
    %v525 = vpop.f32.mrb[0].mxu0
    %526 = vdwg.mxu0
    %527 = vmatprep.subr.mxu0 0.0
    %528 = vmatpush1.msra.mxu0 %v124
    %529 = vmatprep.subr.mxu0 0.0
    %530 = vmatpush1.msra.mxu0 %v125
    %531 = vmatprep.subr.mxu0 0.0
    %532 = vmatpush1.msra.mxu0 %v126
    %533 = vmatprep.subr.mxu0 0.0
    %534 = vmatpush1.msra.mxu0 %v127
    %535 = vmatprep.subr.mxu0 0.0
    %536 = vmatpush1.msra.mxu0 %v128
    %537 = vmatprep.subr.mxu0 0.0
    %538 = vmatpush1.msra.mxu0 %v129
    %539 = vmatprep.subr.mxu0 0.0
    %540 = vmatpush1.msra.mxu0 %v130
    %541 = vmatprep.subr.mxu0 0.0
    %542 = vmatpush1.msra.mxu0 %v131
    %543 = vmatprep.subr.mxu0 0.0
    %544 = vmatpush1.msra.mxu0 %v132
    %545 = vmatprep.subr.mxu0 0.0
    %546 = vmatpush1.msra.mxu0 %v133
    %547 = vmatprep.subr.mxu0 0.0
    %548 = vmatpush1.msra.mxu0 %v134
    %549 = vmatprep.subr.mxu0 0.0
    %550 = vmatpush1.msra.mxu0 %v135
    %551 = vmatprep.subr.mxu0 0.0
    %552 = vmatpush1.msra.mxu0 %v136
    %553 = vmatprep.subr.mxu0 0.0
    %554 = vmatpush1.msra.mxu0 %v137
    %555 = vmatprep.subr.mxu0 0.0
    %556 = vmatpush1.msra.mxu0 %v138
    %557 = vmatprep.subr.mxu0 0.0
    %558 = vmatpush1.msra.mxu0 %v139
    %559 = vmatprep.subr.mxu0 0.0
    %560 = vmatpush1.msra.mxu0 %v140
    %561 = vmatprep.subr.mxu0 0.0
    %562 = vmatpush1.msra.mxu0 %v141
    %563 = vmatprep.subr.mxu0 0.0
    %564 = vmatpush1.msra.mxu0 %v142
    %565 = vmatprep.subr.mxu0 0.0
    %566 = vmatpush1.msra.mxu0 %v143
    %567 = vmatprep.subr.mxu0 0.0
    %568 = vmatpush1.msra.mxu0 %v144
    %569 = vmatprep.subr.mxu0 0.0
    %570 = vmatpush1.msra.mxu0 %v145
    %571 = vmatprep.subr.mxu0 0.0
    %572 = vmatpush1.msra.mxu0 %v146
    %573 = vmatprep.subr.mxu0 0.0
    %574 = vmatpush1.msra.mxu0 %v147
    %575 = vmatprep.subr.mxu0 0.0
    %576 = vmatpush1.msra.mxu0 %v148
    %577 = vmatprep.subr.mxu0 0.0
    %578 = vmatpush1.msra.mxu0 %v149
    %579 = vmatprep.subr.mxu0 0.0
    %580 = vmatpush1.msra.mxu0 %v150
    %581 = vmatprep.subr.mxu0 0.0
    %582 = vmatpush1.msra.mxu0 %v151
    %583 = vmatprep.subr.mxu0 0.0
    %584 = vmatpush1.msra.mxu0 %v152
    %585 = vmatprep.subr.mxu0 0.0
    %586 = vmatpush1.msra.mxu0 %v153
    %587 = vmatprep.subr.mxu0 0.0
    %588 = vmatpush1.msra.mxu0 %v154
    %589 = vmatprep.subr.mxu0 0.0
    %590 = vmatpush1.msra.mxu0 %v155
    %591 = vmatprep.mubr.f32.mxu0 %v45
    %592 = vmatmul.mubr.f32.gmra.mrb[0].mxu0 %v44
    %v593 = vpop.f32.mrb[0].mxu0
    %v594 = vadd.f32 %v524, %v593
    %v595 = vpop.f32.mrb[0].mxu0
    %596 = vdwg.mxu0
    %597 = vmatprep.subr.mxu0 0.0
    %598 = vmatpush1.msra.mxu0 %v156
    %599 = vmatprep.subr.mxu0 0.0
    %600 = vmatpush1.msra.mxu0 %v157
    %601 = vmatprep.subr.mxu0 0.0
    %602 = vmatpush1.msra.mxu0 %v158
    %603 = vmatprep.subr.mxu0 0.0
    %604 = vmatpush1.msra.mxu0 %v159
    %605 = vmatprep.subr.mxu0 0.0
    %606 = vmatpush1.msra.mxu0 %v160
    %607 = vmatprep.subr.mxu0 0.0
    %608 = vmatpush1.msra.mxu0 %v161
    %609 = vmatprep.subr.mxu0 0.0
    %610 = vmatpush1.msra.mxu0 %v162
    %611 = vmatprep.subr.mxu0 0.0
    %612 = vmatpush1.msra.mxu0 %v163
    %613 = vmatprep.subr.mxu0 0.0
    %614 = vmatpush1.msra.mxu0 %v164
    %615 = vmatprep.subr.mxu0 0.0
    %616 = vmatpush1.msra.mxu0 %v165
    %617 = vmatprep.subr.mxu0 0.0
    %618 = vmatpush1.msra.mxu0 %v166
    %619 = vmatprep.subr.mxu0 0.0
    %620 = vmatpush1.msra.mxu0 %v167
    %621 = vmatprep.subr.mxu0 0.0
    %622 = vmatpush1.msra.mxu0 %v168
    %623 = vmatprep.subr.mxu0 0.0
    %624 = vmatpush1.msra.mxu0 %v169
    %625 = vmatprep.subr.mxu0 0.0
    %626 = vmatpush1.msra.mxu0 %v170
    %627 = vmatprep.subr.mxu0 0.0
    %628 = vmatpush1.msra.mxu0 %v171
    %629 = vmatprep.subr.mxu0 0.0
    %630 = vmatpush1.msra.mxu0 %v172
    %631 = vmatprep.subr.mxu0 0.0
    %632 = vmatpush1.msra.mxu0 %v173
    %633 = vmatprep.subr.mxu0 0.0
    %634 = vmatpush1.msra.mxu0 %v174
    %635 = vmatprep.subr.mxu0 0.0
    %636 = vmatpush1.msra.mxu0 %v175
    %637 = vmatprep.subr.mxu0 0.0
    %638 = vmatpush1.msra.mxu0 %v176
    %639 = vmatprep.subr.mxu0 0.0
    %640 = vmatpush1.msra.mxu0 %v177
    %641 = vmatprep.subr.mxu0 0.0
    %642 = vmatpush1.msra.mxu0 %v178
    %643 = vmatprep.subr.mxu0 0.0
    %644 = vmatpush1.msra.mxu0 %v179
    %645 = vmatprep.subr.mxu0 0.0
    %646 = vmatpush1.msra.mxu0 %v180
    %647 = vmatprep.subr.mxu0 0.0
    %648 = vmatpush1.msra.mxu0 %v181
    %649 = vmatprep.subr.mxu0 0.0
    %650 = vmatpush1.msra.mxu0 %v182
    %651 = vmatprep.subr.mxu0 0.0
    %652 = vmatpush1.msra.mxu0 %v183
    %653 = vmatprep.subr.mxu0 0.0
    %654 = vmatpush1.msra.mxu0 %v184
    %655 = vmatprep.subr.mxu0 0.0
    %656 = vmatpush1.msra.mxu0 %v185
    %657 = vmatprep.subr.mxu0 0.0
    %658 = vmatpush1.msra.mxu0 %v186
    %659 = vmatprep.subr.mxu0 0.0
    %660 = vmatpush1.msra.mxu0 %v187
    %661 = vmatprep.mubr.f32.mxu0 %v47
    %662 = vmatmul.mubr.f32.gmra.mrb[0].mxu0 %v46
    %v663 = vpop.f32.mrb[0].mxu0
    %v664 = vadd.f32 %v594, %v663
    %v665 = vpop.f32.mrb[0].mxu0
    %666 = vdwg.mxu0
    %667 = vmatprep.subr.mxu0 0.0
    %668 = vmatpush1.msra.mxu0 %v188
    %669 = vmatprep.subr.mxu0 0.0
    %670 = vmatpush1.msra.mxu0 %v189
    %671 = vmatprep.subr.mxu0 0.0
    %672 = vmatpush1.msra.mxu0 %v190
    %673 = vmatprep.subr.mxu0 0.0
    %674 = vmatpush1.msra.mxu0 %v191
    %675 = vmatprep.subr.mxu0 0.0
    %676 = vmatpush1.msra.mxu0 %v192
    %677 = vmatprep.subr.mxu0 0.0
    %678 = vmatpush1.msra.mxu0 %v193
    %679 = vmatprep.subr.mxu0 0.0
    %680 = vmatpush1.msra.mxu0 %v194
    %681 = vmatprep.subr.mxu0 0.0
    %682 = vmatpush1.msra.mxu0 %v195
    %683 = vmatprep.subr.mxu0 0.0
    %684 = vmatpush1.msra.mxu0 %v196
    %685 = vmatprep.subr.mxu0 0.0
    %686 = vmatpush1.msra.mxu0 %v197
    %687 = vmatprep.subr.mxu0 0.0
    %688 = vmatpush1.msra.mxu0 %v198
    %689 = vmatprep.subr.mxu0 0.0
    %690 = vmatpush1.msra.mxu0 %v199
    %691 = vmatprep.subr.mxu0 0.0
    %692 = vmatpush1.msra.mxu0 %v200
    %693 = vmatprep.subr.mxu0 0.0
    %694 = vmatpush1.msra.mxu0 %v201
    %695 = vmatprep.subr.mxu0 0.0
    %696 = vmatpush1.msra.mxu0 %v202
    %697 = vmatprep.subr.mxu0 0.0
    %698 = vmatpush1.msra.mxu0 %v203
    %699 = vmatprep.subr.mxu0 0.0
    %700 = vmatpush1.msra.mxu0 %v204
    %701 = vmatprep.subr.mxu0 0.0
    %702 = vmatpush1.msra.mxu0 %v205
    %703 = vmatprep.subr.mxu0 0.0
    %704 = vmatpush1.msra.mxu0 %v206
    %705 = vmatprep.subr.mxu0 0.0
    %706 = vmatpush1.msra.mxu0 %v207
    %707 = vmatprep.subr.mxu0 0.0
    %708 = vmatpush1.msra.mxu0 %v208
    %709 = vmatprep.subr.mxu0 0.0
    %710 = vmatpush1.msra.mxu0 %v209
    %711 = vmatprep.subr.mxu0 0.0
    %712 = vmatpush1.msra.mxu0 %v210
    %713 = vmatprep.subr.mxu0 0.0
    %714 = vmatpush1.msra.mxu0 %v211
    %715 = vmatprep.subr.mxu0 0.0
    %716 = vmatpush1.msra.mxu0 %v212
    %717 = vmatprep.subr.mxu0 0.0
    %718 = vmatpush1.msra.mxu0 %v213
    %719 = vmatprep.subr.mxu0 0.0
    %720 = vmatpush1.msra.mxu0 %v214
    %721 = vmatprep.subr.mxu0 0.0
    %722 = vmatpush1.msra.mxu0 %v215
    %723 = vmatprep.subr.mxu0 0.0
    %724 = vmatpush1.msra.mxu0 %v216
    %725 = vmatprep.subr.mxu0 0.0
    %726 = vmatpush1.msra.mxu0 %v217
    %727 = vmatprep.subr.mxu0 0.0
    %728 = vmatpush1.msra.mxu0 %v218
    %729 = vmatprep.subr.mxu0 0.0
    %730 = vmatpush1.msra.mxu0 %v219
    %731 = vmatprep.mubr.f32.mxu0 %v49
    %732 = vmatmul.mubr.f32.gmra.mrb[0].mxu0 %v48
    %v733 = vpop.f32.mrb[0].mxu0
    %v734 = vadd.f32 %v664, %v733
    %v735 = vpop.f32.mrb[0].mxu0
    %736 = vdwg.mxu0
    %737 = vmatprep.subr.mxu0 0.0
    %738 = vmatpush1.msra.mxu0 %v220
    %739 = vmatprep.subr.mxu0 0.0
    %740 = vmatpush1.msra.mxu0 %v221
    %741 = vmatprep.subr.mxu0 0.0
    %742 = vmatpush1.msra.mxu0 %v222
    %743 = vmatprep.subr.mxu0 0.0
    %744 = vmatpush1.msra.mxu0 %v223
    %745 = vmatprep.subr.mxu0 0.0
    %746 = vmatpush1.msra.mxu0 %v224
    %747 = vmatprep.subr.mxu0 0.0
    %748 = vmatpush1.msra.mxu0 %v225
    %749 = vmatprep.subr.mxu0 0.0
    %750 = vmatpush1.msra.mxu0 %v226
    %751 = vmatprep.subr.mxu0 0.0
    %752 = vmatpush1.msra.mxu0 %v227
    %753 = vmatprep.subr.mxu0 0.0
    %754 = vmatpush1.msra.mxu0 %v228
    %755 = vmatprep.subr.mxu0 0.0
    %756 = vmatpush1.msra.mxu0 %v229
    %757 = vmatprep.subr.mxu0 0.0
    %758 = vmatpush1.msra.mxu0 %v230
    %759 = vmatprep.subr.mxu0 0.0
    %760 = vmatpush1.msra.mxu0 %v231
    %761 = vmatprep.subr.mxu0 0.0
    %762 = vmatpush1.msra.mxu0 %v232
    %763 = vmatprep.subr.mxu0 0.0
    %764 = vmatpush1.msra.mxu0 %v233
    %765 = vmatprep.subr.mxu0 0.0
    %766 = vmatpush1.msra.mxu0 %v234
    %767 = vmatprep.subr.mxu0 0.0
    %768 = vmatpush1.msra.mxu0 %v235
    %769 = vmatprep.subr.mxu0 0.0
    %770 = vmatpush1.msra.mxu0 %v236
    %771 = vmatprep.subr.mxu0 0.0
    %772 = vmatpush1.msra.mxu0 %v237
    %773 = vmatprep.subr.mxu0 0.0
    %774 = vmatpush1.msra.mxu0 %v238
    %775 = vmatprep.subr.mxu0 0.0
    %776 = vmatpush1.msra.mxu0 %v239
    %777 = vmatprep.subr.mxu0 0.0
    %778 = vmatpush1.msra.mxu0 %v240
    %779 = vmatprep.subr.mxu0 0.0
    %780 = vmatpush1.msra.mxu0 %v241
    %781 = vmatprep.subr.mxu0 0.0
    %782 = vmatpush1.msra.mxu0 %v242
    %783 = vmatprep.subr.mxu0 0.0
    %784 = vmatpush1.msra.mxu0 %v243
    %785 = vmatprep.subr.mxu0 0.0
    %786 = vmatpush1.msra.mxu0 %v244
    %787 = vmatprep.subr.mxu0 0.0
    %788 = vmatpush1.msra.mxu0 %v245
    %789 = vmatprep.subr.mxu0 0.0
    %790 = vmatpush1.msra.mxu0 %v246
    %791 = vmatprep.subr.mxu0 0.0
    %792 = vmatpush1.msra.mxu0 %v247
    %793 = vmatprep.subr.mxu0 0.0
    %794 = vmatpush1.msra.mxu0 %v248
    %795 = vmatprep.subr.mxu0 0.0
    %796 = vmatpush1.msra.mxu0 %v249
    %797 = vmatprep.subr.mxu0 0.0
    %798 = vmatpush1.msra.mxu0 %v250
    %799 = vmatprep.subr.mxu0 0.0
    %800 = vmatpush1.msra.mxu0 %v251
    %801 = vmatprep.mubr.f32.mxu0 %v51
    %802 = vmatmul.mubr.f32.gmra.mrb[0].mxu0 %v50
    %v803 = vpop.f32.mrb[0].mxu0
    %v804 = vadd.f32 %v734, %v803
    %v805 = vpop.f32.mrb[0].mxu0
    %806 = vdwg.mxu0
    %807 = vmatprep.subr.mxu0 0.0
    %808 = vmatpush1.msra.mxu0 %v252
    %809 = vmatprep.subr.mxu0 0.0
    %810 = vmatpush1.msra.mxu0 %v253
    %811 = vmatprep.subr.mxu0 0.0
    %812 = vmatpush1.msra.mxu0 %v254
    %813 = vmatprep.subr.mxu0 0.0
    %814 = vmatpush1.msra.mxu0 %v255
    %815 = vmatprep.subr.mxu0 0.0
    %816 = vmatpush1.msra.mxu0 %v256
    %817 = vmatprep.subr.mxu0 0.0
    %818 = vmatpush1.msra.mxu0 %v257
    %819 = vmatprep.subr.mxu0 0.0
    %820 = vmatpush1.msra.mxu0 %v258
    %821 = vmatprep.subr.mxu0 0.0
    %822 = vmatpush1.msra.mxu0 %v259
    %823 = vmatprep.subr.mxu0 0.0
    %824 = vmatpush1.msra.mxu0 %v260
    %825 = vmatprep.subr.mxu0 0.0
    %826 = vmatpush1.msra.mxu0 %v261
    %827 = vmatprep.subr.mxu0 0.0
    %828 = vmatpush1.msra.mxu0 %v262
    %829 = vmatprep.subr.mxu0 0.0
    %830 = vmatpush1.msra.mxu0 %v263
    %831 = vmatprep.subr.mxu0 0.0
    %832 = vmatpush1.msra.mxu0 %v264
    %833 = vmatprep.subr.mxu0 0.0
    %834 = vmatpush1.msra.mxu0 %v265
    %835 = vmatprep.subr.mxu0 0.0
    %836 = vmatpush1.msra.mxu0 %v266
    %837 = vmatprep.subr.mxu0 0.0
    %838 = vmatpush1.msra.mxu0 %v267
    %839 = vmatprep.subr.mxu0 0.0
    %840 = vmatpush1.msra.mxu0 %v268
    %841 = vmatprep.subr.mxu0 0.0
    %842 = vmatpush1.msra.mxu0 %v269
    %843 = vmatprep.subr.mxu0 0.0
    %844 = vmatpush1.msra.mxu0 %v270
    %845 = vmatprep.subr.mxu0 0.0
    %846 = vmatpush1.msra.mxu0 %v271
    %847 = vmatprep.subr.mxu0 0.0
    %848 = vmatpush1.msra.mxu0 %v272
    %849 = vmatprep.subr.mxu0 0.0
    %850 = vmatpush1.msra.mxu0 %v273
    %851 = vmatprep.subr.mxu0 0.0
    %852 = vmatpush1.msra.mxu0 %v274
    %853 = vmatprep.subr.mxu0 0.0
    %854 = vmatpush1.msra.mxu0 %v275
    %855 = vmatprep.subr.mxu0 0.0
    %856 = vmatpush1.msra.mxu0 %v276
    %857 = vmatprep.subr.mxu0 0.0
    %858 = vmatpush1.msra.mxu0 %v277
    %859 = vmatprep.subr.mxu0 0.0
    %860 = vmatpush1.msra.mxu0 %v278
    %861 = vmatprep.subr.mxu0 0.0
    %862 = vmatpush1.msra.mxu0 %v279
    %863 = vmatprep.subr.mxu0 0.0
    %864 = vmatpush1.msra.mxu0 %v280
    %865 = vmatprep.subr.mxu0 0.0
    %866 = vmatpush1.msra.mxu0 %v281
    %867 = vmatprep.subr.mxu0 0.0
    %868 = vmatpush1.msra.mxu0 %v282
    %869 = vmatprep.subr.mxu0 0.0
    %870 = vmatpush1.msra.mxu0 %v283
    %871 = vmatprep.mubr.f32.mxu0 %v53
    %872 = vmatmul.mubr.f32.gmra.mrb[0].mxu0 %v52
    %v873 = vpop.f32.mrb[0].mxu0
    %v874 = vadd.f32 %v804, %v873
    %v875 = vpop.f32.mrb[0].mxu0
    %876 = vdwg.mxu0
    %877 = vmatprep.subr.mxu0 0.0
    %878 = vmatpush1.msra.mxu0 %v284
    %879 = vmatprep.subr.mxu0 0.0
    %880 = vmatpush1.msra.mxu0 %v285
    %881 = vmatprep.subr.mxu0 0.0
    %882 = vmatpush1.msra.mxu0 %v286
    %883 = vmatprep.subr.mxu0 0.0
    %884 = vmatpush1.msra.mxu0 %v287
    %885 = vmatprep.subr.mxu0 0.0
    %886 = vmatpush1.msra.mxu0 %v288
    %887 = vmatprep.subr.mxu0 0.0
    %888 = vmatpush1.msra.mxu0 %v289
    %889 = vmatprep.subr.mxu0 0.0
    %890 = vmatpush1.msra.mxu0 %v290
    %891 = vmatprep.subr.mxu0 0.0
    %892 = vmatpush1.msra.mxu0 %v291
    %893 = vmatprep.subr.mxu0 0.0
    %894 = vmatpush1.msra.mxu0 %v292
    %895 = vmatprep.subr.mxu0 0.0
    %896 = vmatpush1.msra.mxu0 %v293
    %897 = vmatprep.subr.mxu0 0.0
    %898 = vmatpush1.msra.mxu0 %v294
    %899 = vmatprep.subr.mxu0 0.0
    %900 = vmatpush1.msra.mxu0 %v295
    %901 = vmatprep.subr.mxu0 0.0
    %902 = vmatpush1.msra.mxu0 %v296
    %903 = vmatprep.subr.mxu0 0.0
    %904 = vmatpush1.msra.mxu0 %v297
    %905 = vmatprep.subr.mxu0 0.0
    %906 = vmatpush1.msra.mxu0 %v298
    %907 = vmatprep.subr.mxu0 0.0
    %908 = vmatpush1.msra.mxu0 %v299
    %909 = vmatprep.subr.mxu0 0.0
    %910 = vmatpush1.msra.mxu0 %v300
    %911 = vmatprep.subr.mxu0 0.0
    %912 = vmatpush1.msra.mxu0 %v301
    %913 = vmatprep.subr.mxu0 0.0
    %914 = vmatpush1.msra.mxu0 %v302
    %915 = vmatprep.subr.mxu0 0.0
    %916 = vmatpush1.msra.mxu0 %v303
    %917 = vmatprep.subr.mxu0 0.0
    %918 = vmatpush1.msra.mxu0 %v304
    %919 = vmatprep.subr.mxu0 0.0
    %920 = vmatpush1.msra.mxu0 %v305
    %921 = vmatprep.subr.mxu0 0.0
    %922 = vmatpush1.msra.mxu0 %v306
    %923 = vmatprep.subr.mxu0 0.0
    %924 = vmatpush1.msra.mxu0 %v307
    %925 = vmatprep.subr.mxu0 0.0
    %926 = vmatpush1.msra.mxu0 %v308
    %927 = vmatprep.subr.mxu0 0.0
    %928 = vmatpush1.msra.mxu0 %v309
    %929 = vmatprep.subr.mxu0 0.0
    %930 = vmatpush1.msra.mxu0 %v310
    %931 = vmatprep.subr.mxu0 0.0
    %932 = vmatpush1.msra.mxu0 %v311
    %933 = vmatprep.subr.mxu0 0.0
    %934 = vmatpush1.msra.mxu0 %v312
    %935 = vmatprep.subr.mxu0 0.0
    %936 = vmatpush1.msra.mxu0 %v313
    %937 = vmatprep.subr.mxu0 0.0
    %938 = vmatpush1.msra.mxu0 %v314
    %939 = vmatprep.subr.mxu0 0.0
    %940 = vmatpush1.msra.mxu0 %v315
    %941 = vmatprep.mubr.f32.mxu0 %v55
    %942 = vmatmul.mubr.f32.gmra.mrb[0].mxu0 %v54
    %v943 = vpop.f32.mrb[0].mxu0
    %v944 = vadd.f32 %v874, %v943
    %v945 = vpop.f32.mrb[0].mxu0
    %946 = vdwg.mxu0
    %947 = vmatprep.subr.mxu0 0.0
    %948 = vmatpush1.msra.mxu0 %v316
    %949 = vmatprep.subr.mxu0 0.0
    %950 = vmatpush1.msra.mxu0 %v317
    %951 = vmatprep.subr.mxu0 0.0
    %952 = vmatpush1.msra.mxu0 %v318
    %953 = vmatprep.subr.mxu0 0.0
    %954 = vmatpush1.msra.mxu0 %v319
    %955 = vmatprep.subr.mxu0 0.0
    %956 = vmatpush1.msra.mxu0 %v320
    %957 = vmatprep.subr.mxu0 0.0
    %958 = vmatpush1.msra.mxu0 %v321
    %959 = vmatprep.subr.mxu0 0.0
    %960 = vmatpush1.msra.mxu0 %v322
    %961 = vmatprep.subr.mxu0 0.0
    %962 = vmatpush1.msra.mxu0 %v323
    %963 = vmatprep.subr.mxu0 0.0
    %964 = vmatpush1.msra.mxu0 %v324
    %965 = vmatprep.subr.mxu0 0.0
    %966 = vmatpush1.msra.mxu0 %v325
    %967 = vmatprep.subr.mxu0 0.0
    %968 = vmatpush1.msra.mxu0 %v326
    %969 = vmatprep.subr.mxu0 0.0
    %970 = vmatpush1.msra.mxu0 %v327
    %971 = vmatprep.subr.mxu0 0.0
    %972 = vmatpush1.msra.mxu0 %v328
    %973 = vmatprep.subr.mxu0 0.0
    %974 = vmatpush1.msra.mxu0 %v329
    %975 = vmatprep.subr.mxu0 0.0
    %976 = vmatpush1.msra.mxu0 %v330
    %977 = vmatprep.subr.mxu0 0.0
    %978 = vmatpush1.msra.mxu0 %v331
    %979 = vmatprep.subr.mxu0 0.0
    %980 = vmatpush1.msra.mxu0 %v332
    %981 = vmatprep.subr.mxu0 0.0
    %982 = vmatpush1.msra.mxu0 %v333
    %983 = vmatprep.subr.mxu0 0.0
    %984 = vmatpush1.msra.mxu0 %v334
    %985 = vmatprep.subr.mxu0 0.0
    %986 = vmatpush1.msra.mxu0 %v335
    %987 = vmatprep.subr.mxu0 0.0
    %988 = vmatpush1.msra.mxu0 %v336
    %989 = vmatprep.subr.mxu0 0.0
    %990 = vmatpush1.msra.mxu0 %v337
    %991 = vmatprep.subr.mxu0 0.0
    %992 = vmatpush1.msra.mxu0 %v338
    %993 = vmatprep.subr.mxu0 0.0
    %994 = vmatpush1.msra.mxu0 %v339
    %995 = vmatprep.subr.mxu0 0.0
    %996 = vmatpush1.msra.mxu0 %v340
    %997 = vmatprep.subr.mxu0 0.0
    %998 = vmatpush1.msra.mxu0 %v341
    %999 = vmatprep.subr.mxu0 0.0
    %1000 = vmatpush1.msra.mxu0 %v342
    %1001 = vmatprep.subr.mxu0 0.0
    %1002 = vmatpush1.msra.mxu0 %v343
    %1003 = vmatprep.subr.mxu0 0.0
    %1004 = vmatpush1.msra.mxu0 %v344
    %1005 = vmatprep.subr.mxu0 0.0
    %1006 = vmatpush1.msra.mxu0 %v345
    %1007 = vmatprep.subr.mxu0 0.0
    %1008 = vmatpush1.msra.mxu0 %v346
    %1009 = vmatprep.subr.mxu0 0.0
    %1010 = vmatpush1.msra.mxu0 %v347
    %1011 = vmatprep.mubr.f32.mxu0 %v57
    %1012 = vmatmul.mubr.f32.gmra.mrb[0].mxu0 %v56
    %v1013 = vpop.f32.mrb[0].mxu0
    %v1014 = vadd.f32 %v944, %v1013
    %v1015 = vpop.f32.mrb[0].mxu0
    %1016 = vdwg.mxu0
    %1017 = vmatprep.subr.mxu0 0.0
    %1018 = vmatpush1.msra.mxu0 %v348
    %1019 = vmatprep.subr.mxu0 0.0
    %1020 = vmatpush1.msra.mxu0 %v349
    %1021 = vmatprep.subr.mxu0 0.0
    %1022 = vmatpush1.msra.mxu0 %v350
    %1023 = vmatprep.subr.mxu0 0.0
    %1024 = vmatpush1.msra.mxu0 %v351
    %1025 = vmatprep.subr.mxu0 0.0
    %1026 = vmatpush1.msra.mxu0 %v352
    %1027 = vmatprep.subr.mxu0 0.0
    %1028 = vmatpush1.msra.mxu0 %v353
    %1029 = vmatprep.subr.mxu0 0.0
    %1030 = vmatpush1.msra.mxu0 %v354
    %1031 = vmatprep.subr.mxu0 0.0
    %1032 = vmatpush1.msra.mxu0 %v355
    %1033 = vmatprep.subr.mxu0 0.0
    %1034 = vmatpush1.msra.mxu0 %v356
    %1035 = vmatprep.subr.mxu0 0.0
    %1036 = vmatpush1.msra.mxu0 %v357
    %1037 = vmatprep.subr.mxu0 0.0
    %1038 = vmatpush1.msra.mxu0 %v358
    %1039 = vmatprep.subr.mxu0 0.0
    %1040 = vmatpush1.msra.mxu0 %v359
    %1041 = vmatprep.subr.mxu0 0.0
    %1042 = vmatpush1.msra.mxu0 %v360
    %1043 = vmatprep.subr.mxu0 0.0
    %1044 = vmatpush1.msra.mxu0 %v361
    %1045 = vmatprep.subr.mxu0 0.0
    %1046 = vmatpush1.msra.mxu0 %v362
    %1047 = vmatprep.subr.mxu0 0.0
    %1048 = vmatpush1.msra.mxu0 %v363
    %1049 = vmatprep.subr.mxu0 0.0
    %1050 = vmatpush1.msra.mxu0 %v364
    %1051 = vmatprep.subr.mxu0 0.0
    %1052 = vmatpush1.msra.mxu0 %v365
    %1053 = vmatprep.subr.mxu0 0.0
    %1054 = vmatpush1.msra.mxu0 %v366
    %1055 = vmatprep.subr.mxu0 0.0
    %1056 = vmatpush1.msra.mxu0 %v367
    %1057 = vmatprep.subr.mxu0 0.0
    %1058 = vmatpush1.msra.mxu0 %v368
    %1059 = vmatprep.subr.mxu0 0.0
    %1060 = vmatpush1.msra.mxu0 %v369
    %1061 = vmatprep.subr.mxu0 0.0
    %1062 = vmatpush1.msra.mxu0 %v370
    %1063 = vmatprep.subr.mxu0 0.0
    %1064 = vmatpush1.msra.mxu0 %v371
    %1065 = vmatprep.subr.mxu0 0.0
    %1066 = vmatpush1.msra.mxu0 %v372
    %1067 = vmatprep.subr.mxu0 0.0
    %1068 = vmatpush1.msra.mxu0 %v373
    %1069 = vmatprep.subr.mxu0 0.0
    %1070 = vmatpush1.msra.mxu0 %v374
    %1071 = vmatprep.subr.mxu0 0.0
    %1072 = vmatpush1.msra.mxu0 %v375
    %1073 = vmatprep.subr.mxu0 0.0
    %1074 = vmatpush1.msra.mxu0 %v376
    %1075 = vmatprep.subr.mxu0 0.0
    %1076 = vmatpush1.msra.mxu0 %v377
    %1077 = vmatprep.subr.mxu0 0.0
    %1078 = vmatpush1.msra.mxu0 %v378
    %1079 = vmatprep.subr.mxu0 0.0
    %1080 = vmatpush1.msra.mxu0 %v379
    %1081 = vmatprep.mubr.f32.mxu0 %v59
    %1082 = vmatmul.mubr.f32.gmra.mrb[0].mxu0 %v58
    %v1083 = vpop.f32.mrb[0].mxu0
    %v1084 = vadd.f32 %v1014, %v1083
    %v1085 = vpop.f32.mrb[0].mxu0
    %1086 = vdwg.mxu0
    %1087 = vst [vmem:[%s3] sm:$0xff] %v1084
    // Predicated region
    $region22: #{new_fc_forward.1} parent=1 // pred_check
      _
    $region23: #{new_fc_forward.1} parent=1 // pred_check_branch
      %1089 = sbr.rel (0) target = $region25
    $region24: #{new_fc_forward.1} parent=1 // pred_region
      _
    $region25: #{new_fc_forward.1} parent=1 // pred_fallthru
      _
    // Predicated region
    $region26: #{new_fc_forward.1} parent=1 // pred_check
      _
    $region27: #{new_fc_forward.1} parent=1 // pred_check_branch
      %1091 = sbr.rel (0) target = $region29
    $region28: #{new_fc_forward.1} parent=1 // pred_region
      _
    $region29: #{new_fc_forward.1} parent=1 // pred_fallthru
      _
    %1092 = vsyncpa [#allocation3], 1
    %1093 = vsyncpa [#allocation5], 1

</llo_original>
